<compile_context>
chip_gen: v6e
topology: v6e:2x2x1
jax: 0.10.0
libtpu: 0.0.40
codegen_flags: <defaults>
</compile_context>

<pallas_src>
import jax
import jax.numpy as jnp
from jax.experimental import pallas as pl
from jax.experimental.pallas import tpu as pltpu


def _sigmoid_kernel(x_ref, o_ref):
    x = x_ref[...]
    # sigmoid(x) = 0.5 * (tanh(x / 2) + 1): a single EUP transcendental per
    # vreg, matches jax.nn.sigmoid to ~1 ulp in f32.
    o_ref[...] = 0.5 * (jnp.tanh(0.5 * x) + 1.0)


@jax.jit
def sigmoid_pallas(x):
    """Elementwise sigmoid matching torch.nn.Sigmoid on an NCHW tensor."""
    n, c, h, w = x.shape
    # Lane-dense 2-D view (1, 1824); whole array is one block, no padding or
    # slicing materialized on the wrapper side.
    x2d = x.reshape(n, c * h * w)

    out2d = pl.pallas_call(
        _sigmoid_kernel,
        out_shape=jax.ShapeDtypeStruct(x2d.shape, x2d.dtype),
        in_specs=[pl.BlockSpec(memory_space=pltpu.MemorySpace.VMEM)],
        out_specs=pl.BlockSpec(memory_space=pltpu.MemorySpace.VMEM),
        # Output reuses the input HBM buffer.
        input_output_aliases={0: 0},
    )(x2d)

    return out2d.reshape(n, c, h, w)


if __name__ == "__main__":
    key = jax.random.PRNGKey(0)
    # Shape implied by the module's forward: (1, 1824, 1, 1)
    x536 = jax.random.normal(key, (1, 1824, 1, 1), dtype=jnp.float32)

    out = sigmoid_pallas(x536)
    out = jax.block_until_ready(out)

    # Sanity check against the pure-JAX reference.
    ref = jax.nn.sigmoid(x536)
    assert out.shape == (1, 1824, 1, 1)
    assert out.dtype == x536.dtype
    assert jnp.allclose(out, ref, atol=1e-6, rtol=1e-6)

    print("KERNEL_OK")
</pallas_src>

<mosaic_0001>
module attributes {stable_mosaic.version = 11 : i64} {
  func.func @_sigmoid_kernel(%arg0: memref<1x1824xf32, #tpu.memory_space<vmem>>, %arg1: memref<1x1824xf32, #tpu.memory_space<vmem>>) attributes {dimension_semantics = [], scalar_prefetch = 0 : i64, scratch_operands = 0 : i64, tpu.core_type = #tpu.core_type<tc>} {
    %c0 = arith.constant 0 : index
    %c0_0 = arith.constant 0 : index
    %0 = vector.load %arg0[%c0, %c0_0] : memref<1x1824xf32, #tpu.memory_space<vmem>>, vector<1x1824xf32>
    %cst = arith.constant 5.000000e-01 : f32
    %1 = vector.broadcast %cst : f32 to vector<1x1824xf32>
    %2 = arith.mulf %1, %0 : vector<1x1824xf32>
    %3 = math.tanh %2 : vector<1x1824xf32>
    %cst_1 = arith.constant 1.000000e+00 : f32
    %4 = vector.broadcast %cst_1 : f32 to vector<1x1824xf32>
    %5 = arith.addf %3, %4 : vector<1x1824xf32>
    %cst_2 = arith.constant 5.000000e-01 : f32
    %6 = vector.broadcast %cst_2 : f32 to vector<1x1824xf32>
    %7 = arith.mulf %6, %5 : vector<1x1824xf32>
    %c0_3 = arith.constant 0 : index
    %c0_4 = arith.constant 0 : index
    %8 = vector.load %arg1[%c0_3, %c0_4] : memref<1x1824xf32, #tpu.memory_space<vmem>>, vector<1x1824xf32>
    tpu.vector_store %arg1[%c0_3, %c0_4], %7 {strides = array<i32>} : memref<1x1824xf32, #tpu.memory_space<vmem>>, vector<1x1824xf32>,
    return
  }
}

</mosaic_0001>

<llo_original>
// kernel: sigmoid_pallas.1
$region0: #{sigmoid_pallas.1}
  #allocation0 [shape = 'u32[]', space=smem, size = 0x4, offset = 0x4, fixed_abs, tag = 'smem constant byte address 0x4 - core index']
  #allocation1 [shape = 'u32[144,128]{1,0:T(1,128)}', space=vmem, size = 0x12000, scoped, tag = 'internal scratch']
  %s0 = inlined_call_operand.vmem [shape: f32[1,1824], index: 0, kind: input, shape index: {}, may-alias: {0,1}]
  %s1 = inlined_call_operand.vmem [shape: f32[1,1824], index: 1, kind: output, shape index: {}, may-alias: {0,1}]
  %s2 = sld [smem:[#allocation0]]
  $region14: #{sigmoid_pallas.1} parent=0
    _
  %s4 = ssub.s32 1, %s2
  %s5 = scalar_select 0, %s4, %s2
  // Predicated region
  $region2: #{sigmoid_pallas.1} parent=0 // pred_check
    _
  $region3: #{sigmoid_pallas.1} parent=0 // pred_check_branch
    %7 = sbr.rel (0) target = $region5
  $region4: #{sigmoid_pallas.1} parent=0 // pred_region
    _
  $region5: #{sigmoid_pallas.1} parent=0 // pred_fallthru
    _
  %v8 = vld [vmem:[%s0] sm:$0xff]
  %v9 = vld [vmem:[%s0 + $0x8] sm:$0x7f]
  %v10 = vmul.f32 %v8, 0.5
  %v11 = vmul.f32 %v9, 0.5
  %v12 = vtanh.pop %v10
  %v13 = vtanh.pop %v11
  %v14 = vadd.f32 %v12, 1.0
  %v15 = vadd.f32 %v13, 1.0
  %v16 = vmul.f32 %v14, 0.5
  %v17 = vmul.f32 %v15, 0.5
  %18 = vst [vmem:[%s1] sm:$0xff] %v16
  %v19 = vlaneseq
  %vm20 = vcmp.ge.s32.totalorder %v19, 0
  %vm21 = vcmp.lt.s32.totalorder %v19, 800
  %vm22 = vmand %vm20, %vm21
  %23 = vst.msk [vmem:[%s1 + $0x8] sm:$0x7f] %vm22, %v17
  // Predicated region
  $region6: #{sigmoid_pallas.1} parent=0 // pred_check
    _
  $region7: #{sigmoid_pallas.1} parent=0 // pred_check_branch
    %25 = sbr.rel (0) target = $region9
  $region8: #{sigmoid_pallas.1} parent=0 // pred_region
    _
  $region9: #{sigmoid_pallas.1} parent=0 // pred_fallthru
    _
  // Predicated region
  $region10: #{sigmoid_pallas.1} parent=0 // pred_check
    _
  $region11: #{sigmoid_pallas.1} parent=0 // pred_check_branch
    %27 = sbr.rel (0) target = $region13
  $region12: #{sigmoid_pallas.1} parent=0 // pred_region
    _
  $region13: #{sigmoid_pallas.1} parent=0 // pred_fallthru
    _

</llo_original>
